<compile_context>
chip_gen: v7x
topology: tpu7x:2x2x1
jax: 0.10.0
libtpu: 0.0.40
codegen_flags: <defaults>
</compile_context>

<pallas_src>
import jax
import jax.numpy as jnp
from jax.experimental import pallas as pl
from jax.experimental.pallas import tpu as pltpu

_BN_EPS = 1e-5


def _round_up(x, m):
    return (x + m - 1) // m * m


def _down_wt_kernel(feat_ref, w_ref, b_ref, o_ref):
    # (TM, 4C) @ (4C, OCp) + bias, then ReLU.  Everything else was folded
    # into w/b on the host.
    y = jnp.dot(feat_ref[...], w_ref[...], preferred_element_type=jnp.float32)
    o_ref[...] = jnp.maximum(y + b_ref[...], 0.0)


def down_wt(x, conv_w, conv_b, bn_gamma, bn_beta, bn_mean, bn_var, *,
            tile_m=1024):
    """x: (N, C, H, W) float32.  conv_w: (out_ch, 4*C, 1, 1).  Returns NCHW."""
    N, C, H, W = x.shape
    assert H % 2 == 0 and W % 2 == 0
    H2, W2 = H // 2, W // 2
    out_ch = conv_w.shape[0]
    M = N * H2 * W2
    K = 4 * C

    # ---- host-side fold: Haar ∘ conv ∘ BN -> one (K, out_ch) matmul --------
    # haar[band, corner], corners ordered (TL, TR, BL, BR),
    # bands ordered (LL, yH0, yH1, yH2) == torch.cat order in the module.
    haar = 0.5 * jnp.array([[1.,  1.,  1.,  1.],
                            [1.,  1., -1., -1.],
                            [1., -1.,  1., -1.],
                            [1., -1., -1.,  1.]], dtype=jnp.float32)
    w2d = conv_w.reshape(out_ch, 4, C).astype(jnp.float32)        # [o, band, c]
    # W_f[(corner, c), o] = sum_band haar[band, corner] * w2d[o, band, c]
    w_fold = jnp.einsum('bk,obc->kco', haar, w2d).reshape(K, out_ch)
    scale = bn_gamma.astype(jnp.float32) * jax.lax.rsqrt(
        bn_var.astype(jnp.float32) + _BN_EPS)
    w_fold = w_fold * scale[None, :]
    b_fold = (conv_b.astype(jnp.float32) - bn_mean.astype(jnp.float32)) * scale \
        + bn_beta.astype(jnp.float32)

    # lane-dense output: pad output channels to a multiple of 128 (zeros -> the
    # padded columns stay 0 after bias+ReLU and are sliced off below).
    OCp = _round_up(out_ch, 128)
    w_fold = jnp.pad(w_fold, ((0, 0), (0, OCp - out_ch)))
    b_fold = jnp.pad(b_fold, ((0, OCp - out_ch),)).reshape(1, OCp)

    # ---- single fused transpose: (N,C,H,W) -> (M, 4C), corner-major --------
    feat = x.astype(jnp.float32).reshape(N, C, H2, 2, W2, 2)
    feat = feat.transpose(0, 2, 4, 3, 5, 1).reshape(M, K)   # [(i*2+j)*C + c]

    # ---- tiling over rows ---------------------------------------------------
    TM = _round_up(min(tile_m, _round_up(M, 8)), 8)
    Mp = _round_up(M, TM)
    if Mp != M:
        feat = jnp.pad(feat, ((0, Mp - M), (0, 0)))
    grid = (Mp // TM,)

    out = pl.pallas_call(
        _down_wt_kernel,
        out_shape=jax.ShapeDtypeStruct((Mp, OCp), jnp.float32),
        grid=grid,
        in_specs=[
            pl.BlockSpec((TM, K), lambda i: (i, 0)),   # activations, tiled
            pl.BlockSpec((K, OCp), lambda i: (0, 0)),  # folded weight (tiny)
            pl.BlockSpec((1, OCp), lambda i: (0, 0)),  # folded bias
        ],
        out_specs=pl.BlockSpec((TM, OCp), lambda i: (i, 0)),
        compiler_params=pltpu.CompilerParams(
            dimension_semantics=("parallel",),
        ),
    )(feat, w_fold, b_fold)

    # strip padding, back to NCHW
    out = out[:M, :out_ch].reshape(N, H2, W2, out_ch).transpose(0, 3, 1, 2)
    return out


def _reference(x, conv_w, conv_b, bn_gamma, bn_beta, bn_mean, bn_var):
    """Pure-JAX reference of the same forward (for correctness check)."""
    N, C, H, W = x.shape
    xb = x.reshape(N, C, H // 2, 2, W // 2, 2)
    a = xb[:, :, :, 0, :, 0]
    b = xb[:, :, :, 0, :, 1]
    c = xb[:, :, :, 1, :, 0]
    d = xb[:, :, :, 1, :, 1]
    ll = (a + b + c + d) * 0.5
    h0 = (a + b - c - d) * 0.5
    h1 = (a - b + c - d) * 0.5
    hh = (a - b - c + d) * 0.5
    cat = jnp.concatenate([ll, h0, h1, hh], axis=1)               # (N, 4C, H2, W2)
    w = conv_w.reshape(conv_w.shape[0], 4 * C)
    y = jnp.einsum('oc,nchw->nohw', w, cat) + conv_b[None, :, None, None]
    inv = 1.0 / jnp.sqrt(bn_var + _BN_EPS)
    y = (y - bn_mean[None, :, None, None]) * (bn_gamma * inv)[None, :, None, None] \
        + bn_beta[None, :, None, None]
    return jnp.maximum(y, 0.0)


if __name__ == "__main__":
    key = jax.random.PRNGKey(0)
    N, C, H, W = 2, 4, 16, 16
    out_ch = 8

    k_x, k_w, k_b = jax.random.split(key, 3)
    x = jax.random.normal(k_x, (N, C, H, W), dtype=jnp.float32)

    # deterministic synthetic parameters (non-trivial BN stats so the fold
    # is actually exercised)
    conv_w = 0.1 * jax.random.normal(k_w, (out_ch, 4 * C, 1, 1), dtype=jnp.float32)
    conv_b = 0.01 * jax.random.normal(k_b, (out_ch,), dtype=jnp.float32)
    idx = jnp.arange(out_ch, dtype=jnp.float32)
    bn_gamma = 1.0 + 0.1 * idx / out_ch
    bn_beta = 0.05 - 0.02 * idx / out_ch
    bn_mean = 0.03 * idx / out_ch
    bn_var = 1.0 + 0.2 * idx / out_ch

    y = jax.block_until_ready(
        down_wt(x, conv_w, conv_b, bn_gamma, bn_beta, bn_mean, bn_var))
    # also exercise a multi-step (pipelined) grid
    y_tiled = jax.block_until_ready(
        down_wt(x, conv_w, conv_b, bn_gamma, bn_beta, bn_mean, bn_var,
                tile_m=32))

    y_ref = _reference(x, conv_w, conv_b, bn_gamma, bn_beta, bn_mean, bn_var)
    assert y.shape == (N, out_ch, H // 2, W // 2)
    assert jnp.allclose(y, y_ref, atol=1e-4, rtol=1e-4)
    assert jnp.allclose(y_tiled, y_ref, atol=1e-4, rtol=1e-4)

    print("KERNEL_OK")
</pallas_src>

<mosaic_0001>
module attributes {stable_mosaic.version = 11 : i64} {
  func.func @_down_wt_kernel(%arg0: i32, %arg1: memref<128x16xf32, #tpu.memory_space<vmem>>, %arg2: memref<16x128xf32, #tpu.memory_space<vmem>>, %arg3: memref<1x128xf32, #tpu.memory_space<vmem>>, %arg4: memref<128x128xf32, #tpu.memory_space<vmem>>) attributes {dimension_semantics = [#tpu.dimension_semantics<parallel>], iteration_bounds = array<i64: 1>, scalar_prefetch = 0 : i64, scratch_operands = 0 : i64, tpu.core_type = #tpu.core_type<tc>, window_params = [{transform_indices = @transform_0, window_bounds = array<i64: 128, 16>}, {pipeline_mode = #tpu.pipeline_mode<synchronous>, transform_indices = @transform_1, window_bounds = array<i64: 16, 128>}, {pipeline_mode = #tpu.pipeline_mode<synchronous>, transform_indices = @transform_2, window_bounds = array<i64: 1, 128>}, {transform_indices = @transform_3, window_bounds = array<i64: 128, 128>}]} {
    %c0 = arith.constant 0 : index
    %c0_0 = arith.constant 0 : index
    %0 = vector.load %arg1[%c0, %c0_0] : memref<128x16xf32, #tpu.memory_space<vmem>>, vector<128x16xf32>
    %c0_1 = arith.constant 0 : index
    %c0_2 = arith.constant 0 : index
    %1 = vector.load %arg2[%c0_1, %c0_2] : memref<16x128xf32, #tpu.memory_space<vmem>>, vector<16x128xf32>
    %cst = arith.constant dense<0.000000e+00> : vector<128x128xf32>
    %2 = tpu.matmul %0, %1, %cst {dimension_numbers = #tpu.dot_dimension_numbers<[1], [0], [0], [1], [0, 0, 1, 1], [], []>} : vector<128x16xf32>, vector<16x128xf32>, vector<128x128xf32> -> vector<128x128xf32>
    %c0_3 = arith.constant 0 : index
    %c0_4 = arith.constant 0 : index
    %3 = vector.load %arg3[%c0_3, %c0_4] : memref<1x128xf32, #tpu.memory_space<vmem>>, vector<1x128xf32>
    %4 = vector.broadcast %3 : vector<1x128xf32> to vector<128x128xf32>
    %5 = arith.addf %2, %4 : vector<128x128xf32>
    %cst_5 = arith.constant 0.000000e+00 : f32
    %6 = vector.broadcast %cst_5 : f32 to vector<128x128xf32>
    %7 = arith.maximumf %5, %6 : vector<128x128xf32>
    %c0_6 = arith.constant 0 : index
    %c0_7 = arith.constant 0 : index
    %8 = vector.load %arg4[%c0_6, %c0_7] : memref<128x128xf32, #tpu.memory_space<vmem>>, vector<128x128xf32>
    tpu.vector_store %arg4[%c0_6, %c0_7], %7 {strides = array<i32>} : memref<128x128xf32, #tpu.memory_space<vmem>>, vector<128x128xf32>,
    return
  }
  func.func @transform_0(%arg0: i32) -> (i32, i32) {
    %c0_i32 = arith.constant 0 : i32
    %c0_i32_0 = arith.constant 0 : i32
    return %arg0, %c0_i32 : i32, i32
  }
  func.func @transform_1(%arg0: i32) -> (i32, i32) {
    %c0_i32 = arith.constant 0 : i32
    %c0_i32_0 = arith.constant 0 : i32
    %c0_i32_1 = arith.constant 0 : i32
    return %c0_i32, %c0_i32_0 : i32, i32
  }
  func.func @transform_2(%arg0: i32) -> (i32, i32) {
    %c0_i32 = arith.constant 0 : i32
    %c0_i32_0 = arith.constant 0 : i32
    %c0_i32_1 = arith.constant 0 : i32
    return %c0_i32, %c0_i32_0 : i32, i32
  }
  func.func @transform_3(%arg0: i32) -> (i32, i32) {
    %c0_i32 = arith.constant 0 : i32
    %c0_i32_0 = arith.constant 0 : i32
    return %arg0, %c0_i32 : i32, i32
  }
}

</mosaic_0001>

<llo_original>
// kernel: tpu_custom_call.1
$region0: #{tpu_custom_call.1}
  #allocation0 [shape = 'u32[]', space=smem, size = 0x4, offset = 0x4, fixed_abs, tag = 'smem constant byte address 0x4 - core index']
  #allocation1 [shape = 'u32[144,128]{1,0:T(1,128)}', space=vmem, size = 0x12000, scoped, tag = 'internal scratch']
  %s0 = inlined_call_operand.vmem [shape: f32[128,16], index: 0, kind: input, shape index: {}]
  %s1 = inlined_call_operand.vmem [shape: f32[16,128], index: 1, kind: input, shape index: {}]
  %s2 = inlined_call_operand.vmem [shape: f32[1,128], index: 2, kind: input, shape index: {}]
  %s3 = inlined_call_operand.hbm [shape: f32[128,128], index: 3, kind: output, shape index: {}]
  %s4 = sld [smem:[#allocation0]]
  $region22: #{tpu_custom_call.1} parent=0
    _
  %s6 = ssub.s32 1, %s4
  %s7 = scalar_select 0, %s6, %s4
  $region1: #{tpu_custom_call.1} parent=0
    #allocation2 [shape = 'u8[65536]{0}', space=vmem, size = 0x10000, scoped, tag = 'output window, operand 0, single buffered']
    #allocation3 [shape = 's32[1]{0}', space=sflag, size = 0x4, scoped, tag = 'scoped memory for tpu_custom_call.1']
    %8 = vsyncpa [#allocation3], 0
    // Predicated region
    $region2: #{tpu_custom_call.1} parent=1 // pred_check
      _
    $region3: #{tpu_custom_call.1} parent=1 // pred_check_branch
      %10 = sbr.rel (0) target = $region5
    $region4: #{tpu_custom_call.1} parent=1 // pred_region
      _
    $region5: #{tpu_custom_call.1} parent=1 // pred_fallthru
      _
    // Predicated region
    $region6: #{tpu_custom_call.1} parent=1 // pred_check
      _
    $region7: #{tpu_custom_call.1} parent=1 // pred_check_branch
      %12 = sbr.rel (0) target = $region9
    $region8: #{tpu_custom_call.1} parent=1 // pred_region
      _
    $region9: #{tpu_custom_call.1} parent=1 // pred_fallthru
      _
    // Predicated region
    $region10: #{tpu_custom_call.1} parent=1 // pred_check
      _
    $region11: #{tpu_custom_call.1} parent=1 // pred_check_branch
      %14 = sbr.rel (0) target = $region13
    $region12: #{tpu_custom_call.1} parent=1 // pred_region
      _
    $region13: #{tpu_custom_call.1} parent=1 // pred_fallthru
      _
    %v15 = vld [vmem:[%s0] sm:$0xff]
    %v16 = vld [vmem:[%s0 + $0x8] sm:$0xff]
    %v17 = vld [vmem:[%s0 + $0x10] sm:$0xff]
    %v18 = vld [vmem:[%s0 + $0x18] sm:$0xff]
    %v19 = vld [vmem:[%s0 + $0x20] sm:$0xff]
    %v20 = vld [vmem:[%s0 + $0x28] sm:$0xff]
    %v21 = vld [vmem:[%s0 + $0x30] sm:$0xff]
    %v22 = vld [vmem:[%s0 + $0x38] sm:$0xff]
    %v23 = vld [vmem:[%s0 + $0x40] sm:$0xff]
    %v24 = vld [vmem:[%s0 + $0x48] sm:$0xff]
    %v25 = vld [vmem:[%s0 + $0x50] sm:$0xff]
    %v26 = vld [vmem:[%s0 + $0x58] sm:$0xff]
    %v27 = vld [vmem:[%s0 + $0x60] sm:$0xff]
    %v28 = vld [vmem:[%s0 + $0x68] sm:$0xff]
    %v29 = vld [vmem:[%s0 + $0x70] sm:$0xff]
    %v30 = vld [vmem:[%s0 + $0x78] sm:$0xff]
    %v31 = vld [vmem:[%s1] sm:$0xff]
    %v32 = vld [vmem:[%s1 + $0x8] sm:$0xff]
    %v33 = vld [vmem:[%s2] sm:$0x1]
    %v35 = vlaneseq
    %v36 = vshrl.u32 %v35, 7
    %v37 = vsub.s32 0, %v36
    %v38 = vrot.slane %v33, %v37
    %vm40 = vcmask 130048
    %v42 = vsel %vm40, %v15, 0
    %v45 = vsel %vm40, %v16, 0
    %v48 = vsel %vm40, %v17, 0
    %v51 = vsel %vm40, %v18, 0
    %v54 = vsel %vm40, %v19, 0
    %v57 = vsel %vm40, %v20, 0
    %v60 = vsel %vm40, %v21, 0
    %v63 = vsel %vm40, %v22, 0
    %v66 = vsel %vm40, %v23, 0
    %v69 = vsel %vm40, %v24, 0
    %v72 = vsel %vm40, %v25, 0
    %v75 = vsel %vm40, %v26, 0
    %v78 = vsel %vm40, %v27, 0
    %v81 = vsel %vm40, %v28, 0
    %v84 = vsel %vm40, %v29, 0
    %v87 = vsel %vm40, %v30, 0
    %89 = vmatprep.subr.mxu0 0.0
    %90 = vmatpush1.msra.mxu0 %v31
    %91 = vmatprep.subr.mxu0 0.0
    %92 = vmatpush1.msra.mxu0 %v32
    %93 = vmatprep.subr.mxu0 0.0
    %94 = vmatpush1.msra.mxu0 0.0
    %95 = vmatprep.subr.mxu0 0.0
    %96 = vmatpush1.msra.mxu0 0.0
    %97 = vmatprep.subr.mxu0 0.0
    %98 = vmatpush1.msra.mxu0 0.0
    %99 = vmatprep.subr.mxu0 0.0
    %100 = vmatpush1.msra.mxu0 0.0
    %101 = vmatprep.subr.mxu0 0.0
    %102 = vmatpush1.msra.mxu0 0.0
    %103 = vmatprep.subr.mxu0 0.0
    %104 = vmatpush1.msra.mxu0 0.0
    %105 = vmatprep.subr.mxu0 0.0
    %106 = vmatpush1.msra.mxu0 0.0
    %107 = vmatprep.subr.mxu0 0.0
    %108 = vmatpush1.msra.mxu0 0.0
    %109 = vmatprep.subr.mxu0 0.0
    %110 = vmatpush1.msra.mxu0 0.0
    %111 = vmatprep.subr.mxu0 0.0
    %112 = vmatpush1.msra.mxu0 0.0
    %113 = vmatprep.subr.mxu0 0.0
    %114 = vmatpush1.msra.mxu0 0.0
    %115 = vmatprep.subr.mxu0 0.0
    %116 = vmatpush1.msra.mxu0 0.0
    %117 = vmatprep.subr.mxu0 0.0
    %118 = vmatpush1.msra.mxu0 0.0
    %119 = vmatprep.subr.mxu0 0.0
    %120 = vmatpush1.msra.mxu0 0.0
    %121 = vmatprep.subr.mxu0 0.0
    %122 = vmatpush1.msra.mxu0 0.0
    %123 = vmatprep.subr.mxu0 0.0
    %124 = vmatpush1.msra.mxu0 0.0
    %125 = vmatprep.subr.mxu0 0.0
    %126 = vmatpush1.msra.mxu0 0.0
    %127 = vmatprep.subr.mxu0 0.0
    %128 = vmatpush1.msra.mxu0 0.0
    %129 = vmatprep.subr.mxu0 0.0
    %130 = vmatpush1.msra.mxu0 0.0
    %131 = vmatprep.subr.mxu0 0.0
    %132 = vmatpush1.msra.mxu0 0.0
    %133 = vmatprep.subr.mxu0 0.0
    %134 = vmatpush1.msra.mxu0 0.0
    %135 = vmatprep.subr.mxu0 0.0
    %136 = vmatpush1.msra.mxu0 0.0
    %137 = vmatprep.subr.mxu0 0.0
    %138 = vmatpush1.msra.mxu0 0.0
    %139 = vmatprep.subr.mxu0 0.0
    %140 = vmatpush1.msra.mxu0 0.0
    %141 = vmatprep.subr.mxu0 0.0
    %142 = vmatpush1.msra.mxu0 0.0
    %143 = vmatprep.subr.mxu0 0.0
    %144 = vmatpush1.msra.mxu0 0.0
    %145 = vmatprep.subr.mxu0 0.0
    %146 = vmatpush1.msra.mxu0 0.0
    %147 = vmatprep.subr.mxu0 0.0
    %148 = vmatpush1.msra.mxu0 0.0
    %149 = vmatprep.subr.mxu0 0.0
    %150 = vmatpush1.msra.mxu0 0.0
    %151 = vmatprep.subr.mxu0 0.0
    %152 = vmatpush1.msra.mxu0 0.0
    %153 = vmatprep.mubr.f32.mxu0 0.0
    %154 = vmatmul.mubr.f32.gmra.mrb[0].mxu0 %v42
    %v155 = vpop.f32.mrb[0].mxu0
    %v156 = vadd.f32 %v38, %v155
    %v157 = vpop.f32.mrb[0].mxu0
    %158 = vmatprep.mubr.f32.mxu0 0.0
    %159 = vmatmul.mubr.f32.gmra.mrb[0].mxu0 %v45
    %v160 = vpop.f32.mrb[0].mxu0
    %v161 = vadd.f32 %v38, %v160
    %v162 = vpop.f32.mrb[0].mxu0
    %163 = vmatprep.mubr.f32.mxu0 0.0
    %164 = vmatmul.mubr.f32.gmra.mrb[0].mxu0 %v48
    %v165 = vpop.f32.mrb[0].mxu0
    %v166 = vadd.f32 %v38, %v165
    %v167 = vpop.f32.mrb[0].mxu0
    %168 = vmatprep.mubr.f32.mxu0 0.0
    %169 = vmatmul.mubr.f32.gmra.mrb[0].mxu0 %v51
    %v170 = vpop.f32.mrb[0].mxu0
    %v171 = vadd.f32 %v38, %v170
    %v172 = vpop.f32.mrb[0].mxu0
    %173 = vmatprep.mubr.f32.mxu0 0.0
    %174 = vmatmul.mubr.f32.gmra.mrb[0].mxu0 %v54
    %v175 = vpop.f32.mrb[0].mxu0
    %v176 = vadd.f32 %v38, %v175
    %v177 = vpop.f32.mrb[0].mxu0
    %178 = vmatprep.mubr.f32.mxu0 0.0
    %179 = vmatmul.mubr.f32.gmra.mrb[0].mxu0 %v57
    %v180 = vpop.f32.mrb[0].mxu0
    %v181 = vadd.f32 %v38, %v180
    %v182 = vpop.f32.mrb[0].mxu0
    %183 = vmatprep.mubr.f32.mxu0 0.0
    %184 = vmatmul.mubr.f32.gmra.mrb[0].mxu0 %v60
    %v185 = vpop.f32.mrb[0].mxu0
    %v186 = vadd.f32 %v38, %v185
    %v187 = vpop.f32.mrb[0].mxu0
    %188 = vmatprep.mubr.f32.mxu0 0.0
    %189 = vmatmul.mubr.f32.gmra.mrb[0].mxu0 %v63
    %v190 = vpop.f32.mrb[0].mxu0
    %v191 = vadd.f32 %v38, %v190
    %v192 = vpop.f32.mrb[0].mxu0
    %193 = vmatprep.mubr.f32.mxu0 0.0
    %194 = vmatmul.mubr.f32.gmra.mrb[0].mxu0 %v66
    %v195 = vpop.f32.mrb[0].mxu0
    %v196 = vadd.f32 %v38, %v195
    %v197 = vpop.f32.mrb[0].mxu0
    %198 = vmatprep.mubr.f32.mxu0 0.0
    %199 = vmatmul.mubr.f32.gmra.mrb[0].mxu0 %v69
    %v200 = vpop.f32.mrb[0].mxu0
    %v201 = vadd.f32 %v38, %v200
    %v202 = vpop.f32.mrb[0].mxu0
    %203 = vmatprep.mubr.f32.mxu0 0.0
    %204 = vmatmul.mubr.f32.gmra.mrb[0].mxu0 %v72
    %v205 = vpop.f32.mrb[0].mxu0
    %v206 = vadd.f32 %v38, %v205
    %v207 = vpop.f32.mrb[0].mxu0
    %208 = vmatprep.mubr.f32.mxu0 0.0
    %209 = vmatmul.mubr.f32.gmra.mrb[0].mxu0 %v75
    %v210 = vpop.f32.mrb[0].mxu0
    %v211 = vadd.f32 %v38, %v210
    %v212 = vpop.f32.mrb[0].mxu0
    %213 = vmatprep.mubr.f32.mxu0 0.0
    %214 = vmatmul.mubr.f32.gmra.mrb[0].mxu0 %v78
    %v215 = vpop.f32.mrb[0].mxu0
    %v216 = vadd.f32 %v38, %v215
    %v217 = vpop.f32.mrb[0].mxu0
    %218 = vmatprep.mubr.f32.mxu0 0.0
    %219 = vmatmul.mubr.f32.gmra.mrb[0].mxu0 %v81
    %v220 = vpop.f32.mrb[0].mxu0
    %v221 = vadd.f32 %v38, %v220
    %v222 = vpop.f32.mrb[0].mxu0
    %223 = vmatprep.mubr.f32.mxu0 0.0
    %224 = vmatmul.mubr.f32.gmra.mrb[0].mxu0 %v84
    %v225 = vpop.f32.mrb[0].mxu0
    %v226 = vadd.f32 %v38, %v225
    %v227 = vpop.f32.mrb[0].mxu0
    %228 = vmatprep.mubr.f32.mxu0 0.0
    %229 = vmatmul.mubr.f32.gmra.mrb[0].mxu0 %v87
    %v230 = vpop.f32.mrb[0].mxu0
    %v231 = vadd.f32 %v38, %v230
    %v232 = vpop.f32.mrb[0].mxu0
    %233 = vdwg.mxu0
    %v234 = vmax.f32 %v156, 0.0
    %v235 = vmax.f32 %v161, 0.0
    %v236 = vmax.f32 %v166, 0.0
    %v237 = vmax.f32 %v171, 0.0
    %v238 = vmax.f32 %v176, 0.0
    %v239 = vmax.f32 %v181, 0.0
    %v240 = vmax.f32 %v186, 0.0
    %v241 = vmax.f32 %v191, 0.0
    %v242 = vmax.f32 %v196, 0.0
    %v243 = vmax.f32 %v201, 0.0
    %v244 = vmax.f32 %v206, 0.0
    %v245 = vmax.f32 %v211, 0.0
    %v246 = vmax.f32 %v216, 0.0
    %v247 = vmax.f32 %v221, 0.0
    %v248 = vmax.f32 %v226, 0.0
    %v249 = vmax.f32 %v231, 0.0
    %250 = vst [vmem:[#allocation2] sm:$0xff] %v234
    %251 = vst [vmem:[#allocation2 + $0x8] sm:$0xff] %v235
    %252 = vst [vmem:[#allocation2 + $0x10] sm:$0xff] %v236
    %253 = vst [vmem:[#allocation2 + $0x18] sm:$0xff] %v237
    %254 = vst [vmem:[#allocation2 + $0x20] sm:$0xff] %v238
    %255 = vst [vmem:[#allocation2 + $0x28] sm:$0xff] %v239
    %256 = vst [vmem:[#allocation2 + $0x30] sm:$0xff] %v240
    %257 = vst [vmem:[#allocation2 + $0x38] sm:$0xff] %v241
    %258 = vst [vmem:[#allocation2 + $0x40] sm:$0xff] %v242
    %259 = vst [vmem:[#allocation2 + $0x48] sm:$0xff] %v243
    %260 = vst [vmem:[#allocation2 + $0x50] sm:$0xff] %v244
    %261 = vst [vmem:[#allocation2 + $0x58] sm:$0xff] %v245
    %262 = vst [vmem:[#allocation2 + $0x60] sm:$0xff] %v246
    %263 = vst [vmem:[#allocation2 + $0x68] sm:$0xff] %v247
    %264 = vst [vmem:[#allocation2 + $0x70] sm:$0xff] %v248
    %265 = vst [vmem:[#allocation2 + $0x78] sm:$0xff] %v249
    // Predicated region
    $region14: #{tpu_custom_call.1} parent=1 // pred_check
      _
    $region15: #{tpu_custom_call.1} parent=1 // pred_check_branch
      %267 = sbr.rel (0) target = $region17
    $region16: #{tpu_custom_call.1} parent=1 // pred_region
      %s269 = ssub.s32 2048, 2048
      %270 = vsyncadd [#allocation3], %s269
      %s271 = sshll.u32 [#allocation2], 4
      %s272 = int_to_ptr.vmem [resolvable:$true] %s271
      %277 = dma.vmem_to_hbm [thread:$0]  %s272, 2048, %s3, [#allocation3], 128, 128, 8
    $region17: #{tpu_custom_call.1} parent=1 // pred_fallthru
      _
    // Predicated region
    $region18: #{tpu_custom_call.1} parent=1 // pred_check
      _
    $region19: #{tpu_custom_call.1} parent=1 // pred_check_branch
      %279 = sbr.rel (0) target = $region21
    $region20: #{tpu_custom_call.1} parent=1 // pred_region
      %280 = dma.done [#allocation3], 2048
    $region21: #{tpu_custom_call.1} parent=1 // pred_fallthru
      _
    %281 = vsyncpa [#allocation3], 1

</llo_original>
